<compile_context>
chip_gen: v7x
topology: tpu7x:2x2x1
jax: 0.10.0
libtpu: 0.0.40
codegen_flags: <defaults>
</compile_context>

<pallas_src>
import functools

import jax
import jax.numpy as jnp
from jax import lax
from jax.experimental import pallas as pl
from jax.experimental.pallas import tpu as pltpu

EPS = 1e-5
NEG_SLOPE = 0.2


def _round_up(x, m):
    return (x + m - 1) // m * m


def _physical_vmem_bytes():
    try:
        info = pltpu.get_tpu_info()
        v = getattr(info, "vmem_capacity_bytes", None)
        if v:
            return int(v)
    except Exception:
        pass
    return 64 * 1024 * 1024          # conservative: v7x per-TC VMEM


def _conv_norm_kernel(patch_ref, w_ref, amat_ref, par_ref, out_ref, acc_ref,
                      *, full_w, real_p):
    # patch_ref : (1, tk, P_pad)        bf16/f32  one batch element, one K tile
    # w_ref     : (kt, c_pad, tk) if full_w (resident, loaded once)
    #             (1,  c_pad, tk) otherwise (tiled over the K grid axis)
    # amat_ref  : (c_pad, c_pad)        f32 group-averaging matrix
    # par_ref   : (c_pad, 8)            f32 packed [bias, gamma, beta, 0...]
    # out_ref   : (1, out_c, P_pad)     f32 (lane-dense over P_pad)
    # acc_ref   : (c_pad, P_pad)        f32 accumulator scratch
    j = pl.program_id(1)

    @pl.when(j == 0)
    def _init():
        acc_ref[...] = jnp.zeros_like(acc_ref)

    w = w_ref[j] if full_w else w_ref[0]          # (c_pad, tk)

    # Conv partial sum on the MXU: (c_pad, tk) @ (tk, P_pad) -> (c_pad, P_pad)
    acc_ref[...] += jnp.dot(w, patch_ref[0],
                            preferred_element_type=jnp.float32)

    @pl.when(j == pl.num_programs(1) - 1)
    def _finalize():
        bias = par_ref[:, 0:1]                     # (c_pad, 1)
        gamma = par_ref[:, 1:2]
        beta = par_ref[:, 2:3]

        y = acc_ref[...] + bias                    # (c_pad, P_pad) f32
        p_pad = y.shape[1]

        # ---- GroupNorm: two-pass stats over the REAL P columns only --------
        if real_p < p_pad:
            lane = lax.broadcasted_iota(jnp.int32, (1, p_pad), 1)
            mask = lane < real_p
            ym = jnp.where(mask, y, 0.0)
        else:
            mask = None
            ym = y
        inv_p = 1.0 / real_p
        mean_c = jnp.sum(ym, axis=1, keepdims=True) * inv_p        # (c_pad, 1)
        mu = jnp.dot(amat_ref[...], mean_c,
                     preferred_element_type=jnp.float32)           # group mean
        d = y - mu
        dm = jnp.where(mask, d, 0.0) if mask is not None else d
        var_c = jnp.sum(dm * dm, axis=1, keepdims=True) * inv_p
        var = jnp.dot(amat_ref[...], var_c,
                      preferred_element_type=jnp.float32)          # group var
        inv = lax.rsqrt(var + EPS)
        yn = d * (inv * gamma) + beta

        # ---- LeakyReLU(0.2); lane-dense store of the real channels ---------
        act = jnp.where(yn >= 0, yn, NEG_SLOPE * yn)
        out_ref[0] = act[:out_ref.shape[1], :].astype(out_ref.dtype)


def _im2col_t(x, kh, kw, stride, k_pad, p_pad, dtype):
    """x: [N, C, H, W] -> patches [N, k_pad, p_pad] via static strided slices.

    K = C*KH*KW on the sublane axis (ordering matches weight.reshape(out_c, K)),
    spatial positions (lane-padded to p_pad) on the lane axis.
    """
    n, c, h, w = x.shape
    oh = (h - kh) // stride + 1
    ow = (w - kw) // stride + 1
    taps = []
    for ki in range(kh):
        for kj in range(kw):
            sl = lax.slice(x, (0, 0, ki, kj),
                           (n, c, ki + (oh - 1) * stride + 1,
                            kj + (ow - 1) * stride + 1),
                           (1, 1, stride, stride))          # [N, C, OH, OW]
            taps.append(sl)
    p = jnp.stack(taps, axis=2)                             # [N, C, KH*KW, OH, OW]
    p = p.reshape(n, c * kh * kw, oh * ow).astype(dtype)
    pads = ((0, 0), (0, k_pad - c * kh * kw), (0, p_pad - oh * ow))
    if any(e for _, e in pads):
        p = jnp.pad(p, pads)
    return p, oh, ow


@functools.partial(jax.jit,
                   static_argnames=("stride", "num_groups", "compute_dtype"))
def conv_norm_unit(x, weight, bias, gamma, beta, *, stride, num_groups,
                   compute_dtype=jnp.bfloat16):
    """x: [N, in_c, H, W] (NCHW, like PyTorch).  Returns [N, out_c, OH, OW]."""
    n, in_c, h, w = x.shape
    out_c, _, kh, kw = weight.shape
    assert out_c % num_groups == 0, "GroupNorm requires out_c % num_groups == 0"
    gs = out_c // num_groups
    k = in_c * kh * kw

    oh = (h - kh) // stride + 1
    ow = (w - kw) // stride + 1
    p = oh * ow
    p_pad = _round_up(p, 128)                    # lane-dense patches/output

    itemsize = jnp.dtype(compute_dtype).itemsize
    c_sub = 16 if itemsize == 2 else 8           # sublane pack for the dtype
    c_pad = _round_up(out_c, c_sub)              # channels live on sublanes

    # Whole weight matrix resident once when it is small (avoids per-batch
    # re-DMA of weights with the (n, kt) grid).
    full_w = c_pad * _round_up(k, 128) * itemsize <= (8 << 20)

    # ---- generation-aware VMEM budget / K-tile selection -------------------
    phys_vmem = _physical_vmem_bytes()
    budget = int(phys_vmem * 0.70)               # ~90 MiB v5e/v6e, ~45 MiB v7x
    vmem_limit = int(phys_vmem * 0.85)

    def vmem_est(tk_):
        if tk_ >= k:
            kp = _round_up(k, 16)
            tk_eff = kp
        else:
            kp = _round_up(k, tk_)
            tk_eff = tk_
        w_term = 2 * c_pad * (kp if full_w else tk_eff) * itemsize
        return (2 * tk_eff * p_pad * itemsize    # patches, double buffered
                + w_term                          # weights
                + c_pad * p_pad * 4               # f32 accumulator
                + 2 * out_c * p_pad * 4           # output, double buffered
                + 2 * (c_pad * c_pad + c_pad * 8) * 4
                + (1 << 20))                      # Mosaic internal slack

    single_k_pad = _round_up(k, 16)
    if k <= 2048 and vmem_est(single_k_pad) <= budget:
        tk = k_pad = single_k_pad
        kt = 1
    else:
        tk = None
        for cand in (2048, 1024, 512, 256, 128):  # prefer 256-multiples
            if cand <= _round_up(k, 128) and vmem_est(cand) <= budget:
                tk = cand
                break
        if tk is None:
            # TODO(synk): spatial (P) tiling with cross-block GroupNorm stats.
            raise NotImplementedError(
                "ConvNormUnit Pallas kernel: feature map too large for VMEM "
                "without spatial tiling (needs P tiling + cross-block "
                "GroupNorm stats).")
        k_pad = _round_up(k, tk)
        kt = k_pad // tk

    patches, oh, ow = _im2col_t(x.astype(compute_dtype), kh, kw, stride,
                                k_pad, p_pad, compute_dtype)

    # weights: [out_c, in_c, KH, KW] -> (kt, c_pad, tk), zero padded
    w_t = weight.reshape(out_c, k).astype(compute_dtype)
    w_t = jnp.pad(w_t, ((0, c_pad - out_c), (0, k_pad - k)))
    w_t = w_t.reshape(c_pad, kt, tk).transpose(1, 0, 2)      # (kt, c_pad, tk)

    # packed params: col 0 bias, col 1 gamma, col 2 beta (padded rows stay 0)
    par = jnp.zeros((c_pad, 8), jnp.float32)
    par = par.at[:out_c, 0].set(bias.astype(jnp.float32))
    par = par.at[:out_c, 1].set(gamma.astype(jnp.float32))
    par = par.at[:out_c, 2].set(beta.astype(jnp.float32))

    # group-averaging matrix: A[i, j] = 1/gs iff i, j in the same (real) group
    grp = jnp.arange(c_pad) // gs
    real = jnp.arange(c_pad) < out_c
    amat = ((grp[:, None] == grp[None, :])
            & real[:, None] & real[None, :]).astype(jnp.float32) / gs

    if full_w:
        w_spec = pl.BlockSpec((kt, c_pad, tk), lambda i, j: (0, 0, 0))
    else:
        w_spec = pl.BlockSpec((1, c_pad, tk), lambda i, j: (j, 0, 0))

    kernel = functools.partial(_conv_norm_kernel, full_w=full_w, real_p=p)

    out = pl.pallas_call(
        kernel,
        out_shape=jax.ShapeDtypeStruct((n, out_c, p_pad), jnp.float32),
        grid_spec=pltpu.PrefetchScalarGridSpec(
            num_scalar_prefetch=0,
            grid=(n, kt),                         # K-reduction axis last
            in_specs=[
                pl.BlockSpec((1, tk, p_pad), lambda i, j: (i, j, 0)),
                w_spec,
                pl.BlockSpec((c_pad, c_pad), lambda i, j: (0, 0)),
                pl.BlockSpec((c_pad, 8), lambda i, j: (0, 0)),
            ],
            out_specs=pl.BlockSpec((1, out_c, p_pad), lambda i, j: (i, 0, 0)),
            scratch_shapes=[pltpu.VMEM((c_pad, p_pad), jnp.float32)],
        ),
        compiler_params=pltpu.CompilerParams(
            dimension_semantics=("parallel", "arbitrary"),
            vmem_limit_bytes=vmem_limit),
    )(patches, w_t, amat, par)

    # drop the lane padding, then a free reshape to NCHW (no transpose).
    return out[:, :, :p].reshape(n, out_c, oh, ow)


def _reference(x, weight, bias, gamma, beta, *, stride, num_groups):
    y = lax.conv_general_dilated(
        x.astype(jnp.float32), weight.astype(jnp.float32),
        window_strides=(stride, stride), padding="VALID",
        dimension_numbers=("NCHW", "OIHW", "NCHW"))
    y = y + bias[None, :, None, None]
    n, c, oh, ow = y.shape
    gs = c // num_groups
    yg = y.reshape(n, num_groups, gs, oh, ow)
    mu = jnp.mean(yg, axis=(2, 3, 4), keepdims=True)
    var = jnp.mean((yg - mu) ** 2, axis=(2, 3, 4), keepdims=True)
    yn = (yg - mu) * lax.rsqrt(var + EPS)
    yn = yn.reshape(n, c, oh, ow) * gamma[None, :, None, None] \
        + beta[None, :, None, None]
    return jnp.where(yn >= 0, yn, NEG_SLOPE * yn)


if __name__ == "__main__":
    # small shapes consistent with the module
    N, IN_C, H, W = 2, 4, 16, 16
    OUT_C, KH, KW, STRIDE = 8, 4, 4, 2
    N_GROUP = 4                      # GroupNorm(out_c // n_group, out_c)
    NUM_GROUPS = OUT_C // N_GROUP    # = 2 groups of 4 channels

    key = jax.random.PRNGKey(0)
    kx, kw_, kb, kg, kbe = jax.random.split(key, 5)

    x = jax.random.normal(kx, (N, IN_C, H, W), dtype=jnp.float32)
    weight = 0.1 * jax.random.normal(kw_, (OUT_C, IN_C, KH, KW),
                                     dtype=jnp.float32)
    bias = 0.1 * jax.random.normal(kb, (OUT_C,), dtype=jnp.float32)
    gamma = 1.0 + 0.1 * jax.random.normal(kg, (OUT_C,), dtype=jnp.float32)
    beta = 0.1 * jax.random.normal(kbe, (OUT_C,), dtype=jnp.float32)

    OH = (H - KH) // STRIDE + 1
    OW = (W - KW) // STRIDE + 1
    ref = _reference(x, weight, bias, gamma, beta,
                     stride=STRIDE, num_groups=NUM_GROUPS)

    # f32 matmul path: tight tolerance against the XLA reference.
    out_f32 = jax.block_until_ready(conv_norm_unit(
        x, weight, bias, gamma, beta, stride=STRIDE, num_groups=NUM_GROUPS,
        compute_dtype=jnp.float32))
    assert out_f32.shape == ref.shape == (N, OUT_C, OH, OW)
    assert jnp.max(jnp.abs(out_f32 - ref)) < 1e-3, "f32 path mismatch"

    # bf16 matmul path (default perf config): f32 accumulation, looser tol
    # (the bf16 quantization of x/weight enters the conv itself by design).
    out_bf16 = jax.block_until_ready(conv_norm_unit(
        x, weight, bias, gamma, beta, stride=STRIDE, num_groups=NUM_GROUPS,
        compute_dtype=jnp.bfloat16))
    assert out_bf16.shape == (N, OUT_C, OH, OW)
    assert jnp.max(jnp.abs(out_bf16 - ref)) < 5e-2, "bf16 path mismatch"

    print("KERNEL_OK")
</pallas_src>

<mosaic_0001>
module attributes {stable_mosaic.version = 11 : i64} {
  func.func @_conv_norm_kernel(%arg0: i32, %arg1: i32, %arg2: memref<1x64x128xf32, #tpu.memory_space<vmem>>, %arg3: memref<1x8x64xf32, #tpu.memory_space<vmem>>, %arg4: memref<8x8xf32, #tpu.memory_space<vmem>>, %arg5: memref<8x8xf32, #tpu.memory_space<vmem>>, %arg6: memref<1x8x128xf32, #tpu.memory_space<vmem>>, %arg7: memref<8x128xf32, #tpu.memory_space<vmem>>) attributes {dimension_semantics = [#tpu.dimension_semantics<parallel>, #tpu.dimension_semantics<arbitrary>], iteration_bounds = array<i64: 2, 1>, scalar_prefetch = 0 : i64, scratch_operands = 1 : i64, tpu.core_type = #tpu.core_type<tc>, window_params = [{transform_indices = @transform_0, window_bounds = array<i64: 1, 64, 128>}, {pipeline_mode = #tpu.pipeline_mode<synchronous>, transform_indices = @transform_1, window_bounds = array<i64: 1, 8, 64>}, {pipeline_mode = #tpu.pipeline_mode<synchronous>, transform_indices = @transform_2, window_bounds = array<i64: 8, 8>}, {pipeline_mode = #tpu.pipeline_mode<synchronous>, transform_indices = @transform_3, window_bounds = array<i64: 8, 8>}, {transform_indices = @transform_4, window_bounds = array<i64: 1, 8, 128>}]} {
    %c0_i32 = arith.constant 0 : i32
    %0 = arith.cmpi eq, %arg1, %c0_i32 : i32
    %1 = arith.extui %0 : i1 to i32
    %c0_i32_0 = arith.constant 0 : i32
    %2 = arith.cmpi ne, %1, %c0_i32_0 : i32
    scf.if %2 {
      %cst_11 = arith.constant 0.000000e+00 : f32
      %15 = vector.broadcast %cst_11 : f32 to vector<8x128xf32>
      %c0_12 = arith.constant 0 : index
      %c0_13 = arith.constant 0 : index
      %16 = vector.load %arg7[%c0_12, %c0_13] : memref<8x128xf32, #tpu.memory_space<vmem>>, vector<8x128xf32>
      tpu.vector_store %arg7[%c0_12, %c0_13], %15 {strides = array<i32>} : memref<8x128xf32, #tpu.memory_space<vmem>>, vector<8x128xf32>,
    } else {
    }
    %3 = arith.index_cast %arg1 : i32 to index
    %c0 = arith.constant 0 : index
    %c0_1 = arith.constant 0 : index
    %4 = vector.load %arg3[%3, %c0, %c0_1] : memref<1x8x64xf32, #tpu.memory_space<vmem>>, vector<1x8x64xf32>
    %5 = vector.shape_cast %4 : vector<1x8x64xf32> to vector<8x64xf32>
    %c0_2 = arith.constant 0 : index
    %c0_3 = arith.constant 0 : index
    %6 = vector.load %arg7[%c0_2, %c0_3] : memref<8x128xf32, #tpu.memory_space<vmem>>, vector<8x128xf32>
    %c0_4 = arith.constant 0 : index
    %c0_5 = arith.constant 0 : index
    %c0_6 = arith.constant 0 : index
    %7 = vector.load %arg2[%c0_4, %c0_5, %c0_6] : memref<1x64x128xf32, #tpu.memory_space<vmem>>, vector<1x64x128xf32>
    %8 = vector.shape_cast %7 : vector<1x64x128xf32> to vector<64x128xf32>
    %cst = arith.constant dense<0.000000e+00> : vector<8x128xf32>
    %9 = tpu.matmul %5, %8, %cst {dimension_numbers = #tpu.dot_dimension_numbers<[1], [0], [0], [1], [0, 0, 1, 1], [], []>} : vector<8x64xf32>, vector<64x128xf32>, vector<8x128xf32> -> vector<8x128xf32>
    %10 = arith.addf %6, %9 : vector<8x128xf32>
    %c0_7 = arith.constant 0 : index
    %c0_8 = arith.constant 0 : index
    %11 = vector.load %arg7[%c0_7, %c0_8] : memref<8x128xf32, #tpu.memory_space<vmem>>, vector<8x128xf32>
    tpu.vector_store %arg7[%c0_7, %c0_8], %10 {strides = array<i32>} : memref<8x128xf32, #tpu.memory_space<vmem>>, vector<8x128xf32>,
    %c0_i32_9 = arith.constant 0 : i32
    %12 = arith.cmpi eq, %arg1, %c0_i32_9 : i32
    %13 = arith.extui %12 : i1 to i32
    %c0_i32_10 = arith.constant 0 : i32
    %14 = arith.cmpi ne, %13, %c0_i32_10 : i32
    scf.if %14 {
      %c0_11 = arith.constant 0 : index
      %c0_12 = arith.constant 0 : index
      %15 = vector.load %arg5[%c0_11, %c0_12] : memref<8x8xf32, #tpu.memory_space<vmem>>, vector<8x1xf32>
      %c0_13 = arith.constant 0 : index
      %c1 = arith.constant 1 : index
      %16 = vector.load %arg5[%c0_13, %c1] : memref<8x8xf32, #tpu.memory_space<vmem>>, vector<8x1xf32>
      %c0_14 = arith.constant 0 : index
      %c2 = arith.constant 2 : index
      %17 = vector.load %arg5[%c0_14, %c2] : memref<8x8xf32, #tpu.memory_space<vmem>>, vector<8x1xf32>
      %c0_15 = arith.constant 0 : index
      %c0_16 = arith.constant 0 : index
      %18 = vector.load %arg7[%c0_15, %c0_16] : memref<8x128xf32, #tpu.memory_space<vmem>>, vector<8x128xf32>
      %19 = vector.broadcast %15 : vector<8x1xf32> to vector<8x128xf32>
      %20 = arith.addf %18, %19 : vector<8x128xf32>
      %21 = tpu.iota {dimensions = array<i32: 1>} : vector<1x128xi32>
      %c49_i32 = arith.constant 49 : i32
      %22 = vector.broadcast %c49_i32 : i32 to vector<1x128xi32>
      %23 = arith.cmpi slt, %21, %22 : vector<1x128xi32>
      %cst_17 = arith.constant 0.000000e+00 : f32
      %24 = vector.shape_cast %23 : vector<1x128xi1> to vector<1x128xi1>
      %25 = vector.broadcast %24 : vector<1x128xi1> to vector<8x128xi1>
      %26 = vector.broadcast %cst_17 : f32 to vector<8x128xf32>
      %27 = arith.select %25, %20, %26 : vector<8x128xi1>, vector<8x128xf32>
      %cst_18 = arith.constant dense<0.000000e+00> : vector<8xf32>
      %28 = vector.multi_reduction <add>, %27, %cst_18 [1] : vector<8x128xf32> to vector<8xf32>
      %29 = vector.shape_cast %28 : vector<8xf32> to vector<8x1xf32>
      %cst_19 = arith.constant 0.0204081628 : f32
      %30 = vector.broadcast %cst_19 : f32 to vector<8x1xf32>
      %31 = arith.mulf %29, %30 : vector<8x1xf32>
      %c0_20 = arith.constant 0 : index
      %c0_21 = arith.constant 0 : index
      %32 = vector.load %arg4[%c0_20, %c0_21] : memref<8x8xf32, #tpu.memory_space<vmem>>, vector<8x8xf32>
      %cst_22 = arith.constant dense<0.000000e+00> : vector<8x1xf32>
      %33 = tpu.matmul %32, %31, %cst_22 {dimension_numbers = #tpu.dot_dimension_numbers<[1], [0], [0], [1], [0, 0, 1, 1], [], []>} : vector<8x8xf32>, vector<8x1xf32>, vector<8x1xf32> -> vector<8x1xf32>
      %34 = vector.broadcast %33 : vector<8x1xf32> to vector<8x128xf32>
      %35 = arith.subf %20, %34 : vector<8x128xf32>
      %cst_23 = arith.constant 0.000000e+00 : f32
      %36 = vector.shape_cast %23 : vector<1x128xi1> to vector<1x128xi1>
      %37 = vector.broadcast %36 : vector<1x128xi1> to vector<8x128xi1>
      %38 = vector.broadcast %cst_23 : f32 to vector<8x128xf32>
      %39 = arith.select %37, %35, %38 : vector<8x128xi1>, vector<8x128xf32>
      %40 = arith.mulf %39, %39 : vector<8x128xf32>
      %cst_24 = arith.constant dense<0.000000e+00> : vector<8xf32>
      %41 = vector.multi_reduction <add>, %40, %cst_24 [1] : vector<8x128xf32> to vector<8xf32>
      %42 = vector.shape_cast %41 : vector<8xf32> to vector<8x1xf32>
      %cst_25 = arith.constant 0.0204081628 : f32
      %43 = vector.broadcast %cst_25 : f32 to vector<8x1xf32>
      %44 = arith.mulf %42, %43 : vector<8x1xf32>
      %c0_26 = arith.constant 0 : index
      %c0_27 = arith.constant 0 : index
      %45 = vector.load %arg4[%c0_26, %c0_27] : memref<8x8xf32, #tpu.memory_space<vmem>>, vector<8x8xf32>
      %cst_28 = arith.constant dense<0.000000e+00> : vector<8x1xf32>
      %46 = tpu.matmul %45, %44, %cst_28 {dimension_numbers = #tpu.dot_dimension_numbers<[1], [0], [0], [1], [0, 0, 1, 1], [], []>} : vector<8x8xf32>, vector<8x1xf32>, vector<8x1xf32> -> vector<8x1xf32>
      %cst_29 = arith.constant 9.99999974E-6 : f32
      %47 = vector.broadcast %cst_29 : f32 to vector<8x1xf32>
      %48 = arith.addf %46, %47 : vector<8x1xf32>
      %49 = math.rsqrt %48 : vector<8x1xf32>
      %50 = arith.mulf %49, %16 : vector<8x1xf32>
      %51 = vector.broadcast %50 : vector<8x1xf32> to vector<8x128xf32>
      %52 = arith.mulf %35, %51 : vector<8x128xf32>
      %53 = vector.broadcast %17 : vector<8x1xf32> to vector<8x128xf32>
      %54 = arith.addf %52, %53 : vector<8x128xf32>
      %cst_30 = arith.constant 0.000000e+00 : f32
      %55 = vector.broadcast %cst_30 : f32 to vector<8x128xf32>
      %56 = arith.cmpf oge, %54, %55 : vector<8x128xf32>
      %cst_31 = arith.constant 2.000000e-01 : f32
      %57 = vector.broadcast %cst_31 : f32 to vector<8x128xf32>
      %58 = arith.mulf %57, %54 : vector<8x128xf32>
      %59 = arith.select %56, %54, %58 : vector<8x128xi1>, vector<8x128xf32>
      %c0_32 = arith.constant 0 : index
      %c0_33 = arith.constant 0 : index
      %c0_34 = arith.constant 0 : index
      %60 = vector.load %arg6[%c0_32, %c0_33, %c0_34] : memref<1x8x128xf32, #tpu.memory_space<vmem>>, vector<1x8x128xf32>
      %61 = vector.shape_cast %60 : vector<1x8x128xf32> to vector<8x128xf32>
      %62 = vector.shape_cast %59 : vector<8x128xf32> to vector<1x8x128xf32>
      tpu.vector_store %arg6[%c0_32, %c0_33, %c0_34], %62 {strides = array<i32>} : memref<1x8x128xf32, #tpu.memory_space<vmem>>, vector<1x8x128xf32>,
    } else {
    }
    return
  }
  func.func @transform_0(%arg0: i32, %arg1: i32) -> (i32, i32, i32) {
    %c0_i32 = arith.constant 0 : i32
    %c0_i32_0 = arith.constant 0 : i32
    return %arg0, %arg1, %c0_i32 : i32, i32, i32
  }
  func.func @transform_1(%arg0: i32, %arg1: i32) -> (i32, i32, i32) {
    %c0_i32 = arith.constant 0 : i32
    %c0_i32_0 = arith.constant 0 : i32
    %c0_i32_1 = arith.constant 0 : i32
    %c0_i32_2 = arith.constant 0 : i32
    return %c0_i32, %c0_i32_0, %c0_i32_1 : i32, i32, i32
  }
  func.func @transform_2(%arg0: i32, %arg1: i32) -> (i32, i32) {
    %c0_i32 = arith.constant 0 : i32
    %c0_i32_0 = arith.constant 0 : i32
    %c0_i32_1 = arith.constant 0 : i32
    return %c0_i32, %c0_i32_0 : i32, i32
  }
  func.func @transform_3(%arg0: i32, %arg1: i32) -> (i32, i32) {
    %c0_i32 = arith.constant 0 : i32
    %c0_i32_0 = arith.constant 0 : i32
    %c0_i32_1 = arith.constant 0 : i32
    return %c0_i32, %c0_i32_0 : i32, i32
  }
  func.func @transform_4(%arg0: i32, %arg1: i32) -> (i32, i32, i32) {
    %c0_i32 = arith.constant 0 : i32
    %c0_i32_0 = arith.constant 0 : i32
    %c0_i32_1 = arith.constant 0 : i32
    return %arg0, %c0_i32, %c0_i32_0 : i32, i32, i32
  }
}

</mosaic_0001>

<llo_original>
// kernel: conv_norm_unit.1
$region0: #{conv_norm_unit.1}
  #allocation0 [shape = 'u32[]', space=smem, size = 0x4, offset = 0x4, fixed_abs, tag = 'smem constant byte address 0x4 - core index']
  #allocation1 [shape = 'u32[144,128]{1,0:T(1,128)}', space=vmem, size = 0x12000, scoped, tag = 'internal scratch']
  #allocation2 [shape = 'f32[8,128]{1,0:T(8,128)}', space=vmem, size = 0x1000, scoped, tag = 'scratch operand']
  %s0 = inlined_call_operand.vmem [shape: f32[2,64,128], index: 0, kind: input, shape index: {}]
  %s1 = inlined_call_operand.vmem [shape: f32[1,8,64], index: 1, kind: input, shape index: {}]
  %s2 = inlined_call_operand.vmem [shape: f32[8,8], index: 2, kind: input, shape index: {}]
  %s3 = inlined_call_operand.vmem [shape: f32[8,8], index: 3, kind: input, shape index: {}]
  %s4 = inlined_call_operand.vmem [shape: f32[2,8,128], index: 4, kind: output, shape index: {}]
  %s5 = sld [smem:[#allocation0]]
  $region57: #{conv_norm_unit.1} parent=0
    _
  %s7 = ssub.s32 1, %s5
  %s8 = scalar_select 0, %s7, %s5
  loop: start=0, step=1, limit=4
  $region2: #{conv_norm_unit.1} parent=0 // loop_pre_header
    _
  $region3: #{conv_norm_unit.1} parent=0 // loop_header
    %s10 = sphi 0, %s14
    %p11 = scmp.ge.s32.totalorder %s10, 4
    %s17 = sphi 0, %s29
    %s18 = sphi 0, %s25
    %s19 = sphi 0, %s17
    %s20 = sphi 0, %s18
    %s21 = sphi 0, %s19
    %s22 = sphi 0, %s20
    %s34 = sphi 0, %s36
    %s37 = sphi 0, %s34
    %s38 = sphi 0, %s37
    %s54 = sphi 0, %s38
    %s58 = sphi 0, %s58
    %s60 = sphi 0, %s58
    %s61 = sphi 0, %s60
    %s75 = sphi 0, %s61
    %s79 = sphi 0, %s79
    %s81 = sphi 0, %s79
    %s82 = sphi 0, %s81
    %s96 = sphi 0, %s82
    %s100 = sphi 0, %s100
    %s102 = sphi 0, %s100
    %s103 = sphi 0, %s102
    %s117 = sphi 0, %s103
    %s123 = sphi 0, %s125
    %s126 = sphi 0, %s123
    %s127 = sphi 0, %s126
    %s143 = sphi 0, %s127
  $region4: #{conv_norm_unit.1} parent=0 // loop_header_branch
    %13 = sbr.rel (%p11) target = $region8
  $region5: #{conv_norm_unit.1} parent=0 // loop_body
    %s15 = ssub.s32 %s10, 1
    %s16 = ssub.s32 %s10, 2
    %s23 = sadd.s32 1, %s18
    %p24 = scmp.ge.s32.totalorder %s23, 1
    %s25 = scalar_select %p24, 0, %s23
    %s26 = sadd.s32 1, %s17
    %s27 = scalar_select %p24, %s26, %s17
    %p28 = scmp.ge.s32.totalorder %s27, 2
    %s29 = scalar_select %p28, 0, %s27
    %s30 = ssub.s32 %s17, %s29
    %s31 = ssub.s32 %s18, %s25
    %s32 = sor.u32 %s30, %s31
    %p33 = scmp.eq.s32.totalorder %s32, 0
    %s35 = sadd.s32 %s34, 1
    %s36 = scalar_select %p33, %s34, %s35
    %p39 = pneg %p33
    %p40 = scmp.eq.s32.totalorder %s10, 1
    %p41 = por %p39, %p40
    %p42 = scmp.ne.s32.totalorder %s34, %s37
    %p43 = scmp.eq.s32.totalorder %s10, 0
    %p44 = por %p42, %p43
    %p45 = scmp.ne.s32.totalorder %s34, %s37
    %p46 = scmp.eq.s32.totalorder %s15, 1
    %p47 = por %p45, %p46
    %p48 = scmp.ne.s32.totalorder %s37, %s38
    %p49 = scmp.eq.s32.totalorder %s15, 0
    %p50 = por %p48, %p49
    %p51 = scmp.ne.s32.totalorder %s37, %s38
    %p52 = scmp.eq.s32.totalorder %s16, 1
    %p53 = por %p51, %p52
    %p55 = scmp.ne.s32.totalorder %s38, %s54
    %p56 = scmp.eq.s32.totalorder %s16, 0
    %p57 = por %p55, %p56
    %s59 = sadd.s32 %s58, 1
    %p62 = scmp.eq.s32.totalorder %s10, 1
    %p63 = scmp.ne.s32.totalorder %s58, %s60
    %p64 = scmp.eq.s32.totalorder %s10, 0
    %p65 = por %p63, %p64
    %p66 = scmp.ne.s32.totalorder %s58, %s60
    %p67 = scmp.eq.s32.totalorder %s15, 1
    %p68 = por %p66, %p67
    %p69 = scmp.ne.s32.totalorder %s60, %s61
    %p70 = scmp.eq.s32.totalorder %s15, 0
    %p71 = por %p69, %p70
    %p72 = scmp.ne.s32.totalorder %s60, %s61
    %p73 = scmp.eq.s32.totalorder %s16, 1
    %p74 = por %p72, %p73
    %p76 = scmp.ne.s32.totalorder %s61, %s75
    %p77 = scmp.eq.s32.totalorder %s16, 0
    %p78 = por %p76, %p77
    %s80 = sadd.s32 %s79, 1
    %p83 = scmp.eq.s32.totalorder %s10, 1
    %p84 = scmp.ne.s32.totalorder %s79, %s81
    %p85 = scmp.eq.s32.totalorder %s10, 0
    %p86 = por %p84, %p85
    %p87 = scmp.ne.s32.totalorder %s79, %s81
    %p88 = scmp.eq.s32.totalorder %s15, 1
    %p89 = por %p87, %p88
    %p90 = scmp.ne.s32.totalorder %s81, %s82
    %p91 = scmp.eq.s32.totalorder %s15, 0
    %p92 = por %p90, %p91
    %p93 = scmp.ne.s32.totalorder %s81, %s82
    %p94 = scmp.eq.s32.totalorder %s16, 1
    %p95 = por %p93, %p94
    %p97 = scmp.ne.s32.totalorder %s82, %s96
    %p98 = scmp.eq.s32.totalorder %s16, 0
    %p99 = por %p97, %p98
    %s101 = sadd.s32 %s100, 1
    %p104 = scmp.eq.s32.totalorder %s10, 1
    %p105 = scmp.ne.s32.totalorder %s100, %s102
    %p106 = scmp.eq.s32.totalorder %s10, 0
    %p107 = por %p105, %p106
    %p108 = scmp.ne.s32.totalorder %s100, %s102
    %p109 = scmp.eq.s32.totalorder %s15, 1
    %p110 = por %p108, %p109
    %p111 = scmp.ne.s32.totalorder %s102, %s103
    %p112 = scmp.eq.s32.totalorder %s15, 0
    %p113 = por %p111, %p112
    %p114 = scmp.ne.s32.totalorder %s102, %s103
    %p115 = scmp.eq.s32.totalorder %s16, 1
    %p116 = por %p114, %p115
    %p118 = scmp.ne.s32.totalorder %s103, %s117
    %p119 = scmp.eq.s32.totalorder %s16, 0
    %p120 = por %p118, %p119
    %s121 = ssub.s32 %s17, %s29
    %p122 = scmp.eq.s32.totalorder %s121, 0
    %s124 = sadd.s32 %s123, 1
    %s125 = scalar_select %p122, %s123, %s124
    %p128 = pneg %p122
    %p129 = scmp.eq.s32.totalorder %s10, 1
    %p130 = por %p128, %p129
    %p131 = scmp.ne.s32.totalorder %s123, %s126
    %p132 = scmp.eq.s32.totalorder %s10, 0
    %p133 = por %p131, %p132
    %p134 = scmp.ne.s32.totalorder %s123, %s126
    %p135 = scmp.eq.s32.totalorder %s15, 1
    %p136 = por %p134, %p135
    %p137 = scmp.ne.s32.totalorder %s126, %s127
    %p138 = scmp.eq.s32.totalorder %s15, 0
    %p139 = por %p137, %p138
    %p140 = scmp.ne.s32.totalorder %s126, %s127
    %p141 = scmp.eq.s32.totalorder %s16, 1
    %p142 = por %p140, %p141
    %p144 = scmp.ne.s32.totalorder %s127, %s143
    %p145 = scmp.eq.s32.totalorder %s16, 0
    %p146 = por %p144, %p145
    %p147 = scmp.le.s32.totalorder 1, %s10
    %p148 = scmp.lt.s32.totalorder %s10, 3
    %p149 = pnand %p147, %p148
    %p150 = pneg %p149
    // Predicated region
    $region9: #{conv_norm_unit.1} parent=5 // pred_check
      _
    $region10: #{conv_norm_unit.1} parent=5 // pred_check_branch
      %152 = sbr.rel (%p149) target = $region12
    $region11: #{conv_norm_unit.1} parent=5 // pred_region
      %s153 = ssub.s32 %s10, 1
      // Predicated region
      $region13: #{conv_norm_unit.1} parent=11 // pred_check
        %p154 = pneg %p71
      $region14: #{conv_norm_unit.1} parent=11 // pred_check_branch
        %156 = sbr.rel (%p154) target = $region16
      $region15: #{conv_norm_unit.1} parent=11 // pred_region
        _
      $region16: #{conv_norm_unit.1} parent=11 // pred_fallthru
        _
      // Predicated region
      $region17: #{conv_norm_unit.1} parent=11 // pred_check
        %p157 = pneg %p92
      $region18: #{conv_norm_unit.1} parent=11 // pred_check_branch
        %159 = sbr.rel (%p157) target = $region20
      $region19: #{conv_norm_unit.1} parent=11 // pred_region
        _
      $region20: #{conv_norm_unit.1} parent=11 // pred_fallthru
        _
      // Predicated region
      $region21: #{conv_norm_unit.1} parent=11 // pred_check
        %p160 = pneg %p113
      $region22: #{conv_norm_unit.1} parent=11 // pred_check_branch
        %162 = sbr.rel (%p160) target = $region24
      $region23: #{conv_norm_unit.1} parent=11 // pred_region
        _
      $region24: #{conv_norm_unit.1} parent=11 // pred_fallthru
        _
    $region12: #{conv_norm_unit.1} parent=5 // pred_fallthru
      _
    %p163 = scmp.lt.s32.totalorder %s10, 2
    // Predicated region
    $region25: #{conv_norm_unit.1} parent=5 // pred_check
      %p164 = pneg %p163
    $region26: #{conv_norm_unit.1} parent=5 // pred_check_branch
      %166 = sbr.rel (%p164) target = $region28
    $region27: #{conv_norm_unit.1} parent=5 // pred_region
      // Predicated region
      $region29: #{conv_norm_unit.1} parent=27 // pred_check
        %p167 = pneg %p44
      $region30: #{conv_norm_unit.1} parent=27 // pred_check_branch
        %169 = sbr.rel (%p167) target = $region32
      $region31: #{conv_norm_unit.1} parent=27 // pred_region
        %s170 = smul.u32 8, %s18
        %p171 = scmp.lt.s32.totalorder %s17, 1
        %s172 = scalar_select %p171, %s17, 1
        %p173 = scmp.lt.s32.totalorder %s170, 7
        %s174 = scalar_select %p173, %s170, 7
        %s175 = smul.addr %s172, 8
        %s176 = sadd.s32 %s174, %s175
        %s177 = smul.addr %s176, 8
        %s178 = scalar_lea.vmem %s0, %s177
        %s179 = smul.u32 8, %s18
      $region32: #{conv_norm_unit.1} parent=27 // pred_fallthru
        _
    $region28: #{conv_norm_unit.1} parent=5 // pred_fallthru
      _
    %p180 = scmp.le.s32.totalorder 1, %s10
    %p181 = scmp.lt.s32.totalorder %s10, 3
    %p182 = pnand %p180, %p181
    %p183 = pneg %p182
    // Predicated region
    $region33: #{conv_norm_unit.1} parent=5 // pred_check
      _
    $region34: #{conv_norm_unit.1} parent=5 // pred_check_branch
      %185 = sbr.rel (%p182) target = $region36
    $region35: #{conv_norm_unit.1} parent=5 // pred_region
      %s186 = ssub.s32 %s10, 1
      %s187 = smul.u32 8, %s20
      %p188 = scmp.lt.s32.totalorder %s19, 1
      %s189 = scalar_select %p188, %s19, 1
      %p190 = scmp.lt.s32.totalorder %s187, 7
      %s191 = scalar_select %p190, %s187, 7
      %s192 = smul.addr %s189, 8
      %s193 = sadd.s32 %s191, %s192
      %s194 = smul.addr %s193, 8
      %s195 = scalar_lea.vmem %s0, %s194
      %p196 = pneg %p50
      %p197 = pneg %p47
      %p198 = pneg %p71
      %p199 = pneg %p68
      %p200 = pneg %p92
      %p201 = pneg %p89
      %p202 = pneg %p113
      %p203 = pneg %p110
      %p204 = pneg %p139
      %p205 = pneg %p136
      %p206 = scmp.lt.s32.totalorder %s19, 1
      %s207 = scalar_select %p206, %s19, 1
      %s208 = smul.addr %s207, 8
      %s209 = scalar_lea.vmem %s4, %s208
      %s210 = smul.u32 8, %s20
      %p211 = scmp.lt.s32.totalorder %s19, 1
      %s212 = scalar_select %p211, %s19, 1
      %p213 = scmp.lt.s32.totalorder %s210, 7
      %s214 = scalar_select %p213, %s210, 7
      %s215 = smul.addr %s212, 8
      %s216 = sadd.s32 %s214, %s215
      %s217 = smul.addr %s216, 8
      %s218 = scalar_lea.vmem %s0, %s217
      %s219 = smul.u32 8, %s20
      %p220 = scmp.lt.s32.totalorder %s19, 1
      %s221 = scalar_select %p220, %s19, 1
      %s222 = smul.addr %s221, 8
      %s223 = scalar_lea.vmem %s4, %s222
      %p224 = scmp.eq.s32.totalorder %s20, 0
      // Predicated region
      $region37: #{conv_norm_unit.1} parent=35 // pred_check
        %p225 = pneg %p224
      $region38: #{conv_norm_unit.1} parent=35 // pred_check_branch
        %227 = sbr.rel (%p225) target = $region40
      $region39: #{conv_norm_unit.1} parent=35 // pred_region
        %228 = vst [vmem:[#allocation2] sm:$0xff] 0.0
      $region40: #{conv_norm_unit.1} parent=35 // pred_fallthru
        _
      %s229 = smul.u32 %s20, 8
      %s230 = scalar_lea.vmem %s1, %s229
      %v231 = vld [vmem:[%s230] sm:$0xff]
      %v232 = vld [vmem:[#allocation2] sm:$0xff]
      %v233 = vld [vmem:[%s218] sm:$0xff]
      %v234 = vld [vmem:[%s218 + $0x8] sm:$0xff]
      %v235 = vld [vmem:[%s218 + $0x10] sm:$0xff]
      %v236 = vld [vmem:[%s218 + $0x18] sm:$0xff]
      %v237 = vld [vmem:[%s218 + $0x20] sm:$0xff]
      %v238 = vld [vmem:[%s218 + $0x28] sm:$0xff]
      %v239 = vld [vmem:[%s218 + $0x30] sm:$0xff]
      %v240 = vld [vmem:[%s218 + $0x38] sm:$0xff]
      %vm241 = vcmask 523264
      %v243 = vsel %vm241, %v231, 0
      %245 = vmatprep.subr.mxu0 0.0
      %246 = vmatpush1.msra.mxu0 %v233
      %247 = vmatprep.subr.mxu0 0.0
      %248 = vmatpush1.msra.mxu0 %v234
      %249 = vmatprep.subr.mxu0 0.0
      %250 = vmatpush1.msra.mxu0 %v235
      %251 = vmatprep.subr.mxu0 0.0
      %252 = vmatpush1.msra.mxu0 %v236
      %253 = vmatprep.subr.mxu0 0.0
      %254 = vmatpush1.msra.mxu0 %v237
      %255 = vmatprep.subr.mxu0 0.0
      %256 = vmatpush1.msra.mxu0 %v238
      %257 = vmatprep.subr.mxu0 0.0
      %258 = vmatpush1.msra.mxu0 %v239
      %259 = vmatprep.subr.mxu0 0.0
      %260 = vmatpush1.msra.mxu0 %v240
      %261 = vmatprep.subr.mxu0 0.0
      %262 = vmatpush1.msra.mxu0 0.0
      %263 = vmatprep.subr.mxu0 0.0
      %264 = vmatpush1.msra.mxu0 0.0
      %265 = vmatprep.subr.mxu0 0.0
      %266 = vmatpush1.msra.mxu0 0.0
      %267 = vmatprep.subr.mxu0 0.0
      %268 = vmatpush1.msra.mxu0 0.0
      %269 = vmatprep.subr.mxu0 0.0
      %270 = vmatpush1.msra.mxu0 0.0
      %271 = vmatprep.subr.mxu0 0.0
      %272 = vmatpush1.msra.mxu0 0.0
      %273 = vmatprep.subr.mxu0 0.0
      %274 = vmatpush1.msra.mxu0 0.0
      %275 = vmatprep.subr.mxu0 0.0
      %276 = vmatpush1.msra.mxu0 0.0
      %277 = vmatprep.subr.mxu0 0.0
      %278 = vmatpush1.msra.mxu0 0.0
      %279 = vmatprep.subr.mxu0 0.0
      %280 = vmatpush1.msra.mxu0 0.0
      %281 = vmatprep.subr.mxu0 0.0
      %282 = vmatpush1.msra.mxu0 0.0
      %283 = vmatprep.subr.mxu0 0.0
      %284 = vmatpush1.msra.mxu0 0.0
      %285 = vmatprep.subr.mxu0 0.0
      %286 = vmatpush1.msra.mxu0 0.0
      %287 = vmatprep.subr.mxu0 0.0
      %288 = vmatpush1.msra.mxu0 0.0
      %289 = vmatprep.subr.mxu0 0.0
      %290 = vmatpush1.msra.mxu0 0.0
      %291 = vmatprep.subr.mxu0 0.0
      %292 = vmatpush1.msra.mxu0 0.0
      %293 = vmatprep.subr.mxu0 0.0
      %294 = vmatpush1.msra.mxu0 0.0
      %295 = vmatprep.subr.mxu0 0.0
      %296 = vmatpush1.msra.mxu0 0.0
      %297 = vmatprep.subr.mxu0 0.0
      %298 = vmatpush1.msra.mxu0 0.0
      %299 = vmatprep.subr.mxu0 0.0
      %300 = vmatpush1.msra.mxu0 0.0
      %301 = vmatprep.subr.mxu0 0.0
      %302 = vmatpush1.msra.mxu0 0.0
      %303 = vmatprep.subr.mxu0 0.0
      %304 = vmatpush1.msra.mxu0 0.0
      %305 = vmatprep.subr.mxu0 0.0
      %306 = vmatpush1.msra.mxu0 0.0
      %307 = vmatprep.subr.mxu0 0.0
      %308 = vmatpush1.msra.mxu0 0.0
      %309 = vmatprep.mubr.f32.mxu0 0.0
      %310 = vmatmul.mubr.f32.gmra.mrb[0].mxu0 %v243
      %v311 = vpop.f32.mrb[0].mxu0
      %v312 = vadd.f32 0.0, %v311
      %v313 = vpop.f32.mrb[0].mxu0
      %314 = vdwg.mxu0
      %v315 = vadd.f32 %v232, %v312
      %316 = vst [vmem:[#allocation2] sm:$0xff] %v315
      // Predicated region
      $region41: #{conv_norm_unit.1} parent=35 // pred_check
        %p317 = pneg %p224
      $region42: #{conv_norm_unit.1} parent=35 // pred_check_branch
        %319 = sbr.rel (%p317) target = $region44
      $region43: #{conv_norm_unit.1} parent=35 // pred_region
        %v320 = vld [vmem:[%s3] sm:$0xff]
        %v321 = vld [vmem:[#allocation2] sm:$0xff]
        %323 = vset.pattern.permute.xlu0 0
        %324 = vperm.xlu0 %323, %v320
        %v325 = vpop.permute.xlu0 %324
        %v327 = vadd.f32 %v321, %v325
        %v328 = vlaneseq
        %v329 = vand.u32 %v328, 127
        %vm330 = vcmp.lt.s32.totalorder %v329, 49
        %v331 = vsel %vm330, 1, 0
        %vm332 = vcmp.eq.s32.totalorder %v331, 1
        %v333 = vsel %vm332, %v327, 0.0
        %334 = vadd.xlane.f32.xlu0 %v333
        %v335 = vpop.xlane.xlu0 %334
        %v336 = vmul.f32 %v335, 0.020408163
        %v337 = vld [vmem:[%s2] sm:$0xff]
        %vm338 = vcmask 64512
        %v340 = vsel %vm338, %v337, 0
        %342 = vmatprep.subr.mxu0 0.0
        %343 = vmatpush1.msra.mxu0 %v336
        %344 = vmatprep.subr.mxu0 0.0
        %345 = vmatpush1.msra.mxu0 0.0
        %346 = vmatprep.subr.mxu0 0.0
        %347 = vmatpush1.msra.mxu0 0.0
        %348 = vmatprep.subr.mxu0 0.0
        %349 = vmatpush1.msra.mxu0 0.0
        %350 = vmatprep.subr.mxu0 0.0
        %351 = vmatpush1.msra.mxu0 0.0
        %352 = vmatprep.subr.mxu0 0.0
        %353 = vmatpush1.msra.mxu0 0.0
        %354 = vmatprep.subr.mxu0 0.0
        %355 = vmatpush1.msra.mxu0 0.0
        %356 = vmatprep.subr.mxu0 0.0
        %357 = vmatpush1.msra.mxu0 0.0
        %358 = vmatprep.subr.mxu0 0.0
        %359 = vmatpush1.msra.mxu0 0.0
        %360 = vmatprep.subr.mxu0 0.0
        %361 = vmatpush1.msra.mxu0 0.0
        %362 = vmatprep.subr.mxu0 0.0
        %363 = vmatpush1.msra.mxu0 0.0
        %364 = vmatprep.subr.mxu0 0.0
        %365 = vmatpush1.msra.mxu0 0.0
        %366 = vmatprep.subr.mxu0 0.0
        %367 = vmatpush1.msra.mxu0 0.0
        %368 = vmatprep.subr.mxu0 0.0
        %369 = vmatpush1.msra.mxu0 0.0
        %370 = vmatprep.subr.mxu0 0.0
        %371 = vmatpush1.msra.mxu0 0.0
        %372 = vmatprep.subr.mxu0 0.0
        %373 = vmatpush1.msra.mxu0 0.0
        %374 = vmatprep.subr.mxu0 0.0
        %375 = vmatpush1.msra.mxu0 0.0
        %376 = vmatprep.subr.mxu0 0.0
        %377 = vmatpush1.msra.mxu0 0.0
        %378 = vmatprep.subr.mxu0 0.0
        %379 = vmatpush1.msra.mxu0 0.0
        %380 = vmatprep.subr.mxu0 0.0
        %381 = vmatpush1.msra.mxu0 0.0
        %382 = vmatprep.subr.mxu0 0.0
        %383 = vmatpush1.msra.mxu0 0.0
        %384 = vmatprep.subr.mxu0 0.0
        %385 = vmatpush1.msra.mxu0 0.0
        %386 = vmatprep.subr.mxu0 0.0
        %387 = vmatpush1.msra.mxu0 0.0
        %388 = vmatprep.subr.mxu0 0.0
        %389 = vmatpush1.msra.mxu0 0.0
        %390 = vmatprep.subr.mxu0 0.0
        %391 = vmatpush1.msra.mxu0 0.0
        %392 = vmatprep.subr.mxu0 0.0
        %393 = vmatpush1.msra.mxu0 0.0
        %394 = vmatprep.subr.mxu0 0.0
        %395 = vmatpush1.msra.mxu0 0.0
        %396 = vmatprep.subr.mxu0 0.0
        %397 = vmatpush1.msra.mxu0 0.0
        %398 = vmatprep.subr.mxu0 0.0
        %399 = vmatpush1.msra.mxu0 0.0
        %400 = vmatprep.subr.mxu0 0.0
        %401 = vmatpush1.msra.mxu0 0.0
        %402 = vmatprep.subr.mxu0 0.0
        %403 = vmatpush1.msra.mxu0 0.0
        %404 = vmatprep.subr.mxu0 0.0
        %405 = vmatpush1.msra.mxu0 0.0
        %406 = vmatprep.mubr.f32.mxu0 0.0
        %407 = vmatmul.mubr.f32.gmra.mrb[0].mxu0 %v340
        %v408 = vpop.f32.mrb[0].mxu0
        %v409 = vadd.f32 0.0, %v408
        %v410 = vpop.f32.mrb[0].mxu0
        %411 = vdwg.mxu0
        %413 = vset.pattern.permute.xlu0 0
        %414 = vperm.xlu0 %413, %v409
        %v415 = vpop.permute.xlu0 %414
        %v417 = vsub.f32 %v327, %v415
        %v418 = vsel %vm332, %v417, 0.0
        %v419 = vmul.f32 %v418, %v418
        %420 = vadd.xlane.f32.xlu0 %v419
        %v421 = vpop.xlane.xlu0 %420
        %v422 = vmul.f32 %v421, 0.020408163
        %423 = vmatprep.subr.mxu0 0.0
        %424 = vmatpush1.msra.mxu0 %v422
        %425 = vmatprep.subr.mxu0 0.0
        %426 = vmatpush1.msra.mxu0 0.0
        %427 = vmatprep.subr.mxu0 0.0
        %428 = vmatpush1.msra.mxu0 0.0
        %429 = vmatprep.subr.mxu0 0.0
        %430 = vmatpush1.msra.mxu0 0.0
        %431 = vmatprep.subr.mxu0 0.0
        %432 = vmatpush1.msra.mxu0 0.0
        %433 = vmatprep.subr.mxu0 0.0
        %434 = vmatpush1.msra.mxu0 0.0
        %435 = vmatprep.subr.mxu0 0.0
        %436 = vmatpush1.msra.mxu0 0.0
        %437 = vmatprep.subr.mxu0 0.0
        %438 = vmatpush1.msra.mxu0 0.0
        %439 = vmatprep.subr.mxu0 0.0
        %440 = vmatpush1.msra.mxu0 0.0
        %441 = vmatprep.subr.mxu0 0.0
        %442 = vmatpush1.msra.mxu0 0.0
        %443 = vmatprep.subr.mxu0 0.0
        %444 = vmatpush1.msra.mxu0 0.0
        %445 = vmatprep.subr.mxu0 0.0
        %446 = vmatpush1.msra.mxu0 0.0
        %447 = vmatprep.subr.mxu0 0.0
        %448 = vmatpush1.msra.mxu0 0.0
        %449 = vmatprep.subr.mxu0 0.0
        %450 = vmatpush1.msra.mxu0 0.0
        %451 = vmatprep.subr.mxu0 0.0
        %452 = vmatpush1.msra.mxu0 0.0
        %453 = vmatprep.subr.mxu0 0.0
        %454 = vmatpush1.msra.mxu0 0.0
        %455 = vmatprep.subr.mxu0 0.0
        %456 = vmatpush1.msra.mxu0 0.0
        %457 = vmatprep.subr.mxu0 0.0
        %458 = vmatpush1.msra.mxu0 0.0
        %459 = vmatprep.subr.mxu0 0.0
        %460 = vmatpush1.msra.mxu0 0.0
        %461 = vmatprep.subr.mxu0 0.0
        %462 = vmatpush1.msra.mxu0 0.0
        %463 = vmatprep.subr.mxu0 0.0
        %464 = vmatpush1.msra.mxu0 0.0
        %465 = vmatprep.subr.mxu0 0.0
        %466 = vmatpush1.msra.mxu0 0.0
        %467 = vmatprep.subr.mxu0 0.0
        %468 = vmatpush1.msra.mxu0 0.0
        %469 = vmatprep.subr.mxu0 0.0
        %470 = vmatpush1.msra.mxu0 0.0
        %471 = vmatprep.subr.mxu0 0.0
        %472 = vmatpush1.msra.mxu0 0.0
        %473 = vmatprep.subr.mxu0 0.0
        %474 = vmatpush1.msra.mxu0 0.0
        %475 = vmatprep.subr.mxu0 0.0
        %476 = vmatpush1.msra.mxu0 0.0
        %477 = vmatprep.subr.mxu0 0.0
        %478 = vmatpush1.msra.mxu0 0.0
        %479 = vmatprep.subr.mxu0 0.0
        %480 = vmatpush1.msra.mxu0 0.0
        %481 = vmatprep.subr.mxu0 0.0
        %482 = vmatpush1.msra.mxu0 0.0
        %483 = vmatprep.subr.mxu0 0.0
        %484 = vmatpush1.msra.mxu0 0.0
        %485 = vmatprep.subr.mxu0 0.0
        %486 = vmatpush1.msra.mxu0 0.0
        %487 = vmatprep.mubr.f32.mxu0 0.0
        %488 = vmatmul.mubr.f32.gmra.mrb[0].mxu0 %v340
        %v489 = vpop.f32.mrb[0].mxu0
        %v490 = vadd.f32 1e-05, %v489
        %v491 = vpop.f32.mrb[0].mxu0
        %492 = vdwg.mxu0
        %v493 = vrsqrt.pop %v490
        %494 = vrot.lane.b32.xlu0 %v320, 127
        %v495 = vpop.permute.xlu0 %494
        %v497 = vmul.f32 %v493, %v495
        %499 = vset.pattern.permute.xlu0 0
        %500 = vperm.xlu0 %499, %v497
        %v501 = vpop.permute.xlu0 %500
        %v503 = vmul.f32 %v417, %v501
        %504 = vset.pattern.permute.xlu0 2
        %505 = vperm.xlu0 %504, %v320
        %v506 = vpop.permute.xlu0 %505
        %v508 = vadd.f32 %v503, %v506
        %vm509 = vcmp.ge.f32.partialorder %v508, 0.0
        %v510 = vmul.f32 %v508, 0.2
        %v511 = vsel %vm509, %v508, %v510
        %512 = vst [vmem:[%s223] sm:$0xff] %v511
      $region44: #{conv_norm_unit.1} parent=35 // pred_fallthru
        _
      %p513 = scmp.lt.s32.totalorder %s19, 1
      %s514 = scalar_select %p513, %s19, 1
      %s515 = smul.addr %s514, 8
      %s516 = scalar_lea.vmem %s4, %s515
      // Predicated region
      $region45: #{conv_norm_unit.1} parent=35 // pred_check
        %p517 = pneg %p136
      $region46: #{conv_norm_unit.1} parent=35 // pred_check_branch
        %519 = sbr.rel (%p517) target = $region48
      $region47: #{conv_norm_unit.1} parent=35 // pred_region
        _
      $region48: #{conv_norm_unit.1} parent=35 // pred_fallthru
        _
    $region36: #{conv_norm_unit.1} parent=5 // pred_fallthru
      _
    %p520 = scmp.le.s32.totalorder 2, %s10
    // Predicated region
    $region49: #{conv_norm_unit.1} parent=5 // pred_check
      %p521 = pneg %p520
    $region50: #{conv_norm_unit.1} parent=5 // pred_check_branch
      %523 = sbr.rel (%p521) target = $region52
    $region51: #{conv_norm_unit.1} parent=5 // pred_region
      %s524 = ssub.s32 %s10, 2
      // Predicated region
      $region53: #{conv_norm_unit.1} parent=51 // pred_check
        %p525 = pneg %p142
      $region54: #{conv_norm_unit.1} parent=51 // pred_check_branch
        %527 = sbr.rel (%p525) target = $region56
      $region55: #{conv_norm_unit.1} parent=51 // pred_region
        %p528 = scmp.lt.s32.totalorder %s21, 1
        %s529 = scalar_select %p528, %s21, 1
        %s530 = smul.addr %s529, 8
        %s531 = scalar_lea.vmem %s4, %s530
      $region56: #{conv_norm_unit.1} parent=51 // pred_fallthru
        _
    $region52: #{conv_norm_unit.1} parent=5 // pred_fallthru
      _
  $region6: #{conv_norm_unit.1} parent=0 // loop_footer
    %s14 = sadd.s32 1, %s10
  $region7: #{conv_norm_unit.1} parent=0 // loop_footer_branch
    %9 = sbr.rel target = $region3
  $region8: #{conv_norm_unit.1} parent=0 // loop_exit
    _

</llo_original>
